<compile_context>
chip_gen: v7x
topology: tpu7x:2x2x1
jax: 0.10.0
libtpu: 0.0.40
codegen_flags: <defaults>
</compile_context>

<pallas_src>
import functools

import jax
import jax.numpy as jnp
from jax.experimental import pallas as pl
from jax.experimental.pallas import tpu as pltpu

HIDDEN = 32
FC1 = 16


def drqn_kernel(x_ref, h0_ref, wih_ref, whh_ref, brnn_ref,
                w1_ref, b1_ref, w2_ref, b2_ref,
                q_ref, hT_ref, h_all, *, L, N):
    """Recurrent unroll with batched input projection and batched MLP head.

    x_ref : (L*N, Dobs)   h0_ref : (N, 32)
    q_ref : (L*N, A)      hT_ref : (N, 32)
    h_all : (L*N, 32) VMEM scratch holding every timestep's hidden state.
    """
    # ---- batched input projection (off the serial critical path) ----------
    # One MXU push over all L*N rows; the RNN bias (b_ih + b_hh) folded in here
    # so no per-step broadcast is emitted inside the unrolled loop.
    xw = (jnp.dot(x_ref[...], wih_ref[...], preferred_element_type=jnp.float32)
          + brnn_ref[...])                                    # (L*N, 32)

    # ---- serial recurrence: only h_prev @ W_hh + tanh per step ------------
    whh = whh_ref[...]                                        # (32, 32)
    h = h0_ref[...]                                           # (N, 32), carried in vregs
    for t in range(L):
        h = jnp.tanh(xw[t * N:(t + 1) * N, :]
                     + jnp.dot(h, whh, preferred_element_type=jnp.float32))
        h_all[t * N:(t + 1) * N, :] = h                       # stash for batched head
    hT_ref[...] = h

    # ---- batched MLP head over all L*N hidden states -----------------------
    z = jnp.maximum(
        jnp.dot(h_all[...], w1_ref[...], preferred_element_type=jnp.float32)
        + b1_ref[...], 0.0)                                   # (L*N, 16)
    q_ref[...] = (jnp.dot(z, w2_ref[...], preferred_element_type=jnp.float32)
                  + b2_ref[...])                              # (L*N, A): single store


def drqn_forward(x, h0, params):
    L, N, Dobs = x.shape
    A = params["w2"].shape[1]
    # Present activations as dense 2-D slabs; wrapper reshape is layout plumbing.
    x2 = x.reshape(L * N, Dobs)
    vmem = pl.BlockSpec(memory_space=pltpu.MemorySpace.VMEM)
    kernel = functools.partial(drqn_kernel, L=L, N=N)
    q2, hT = pl.pallas_call(
        kernel,
        out_shape=(jax.ShapeDtypeStruct((L * N, A), jnp.float32),
                   jax.ShapeDtypeStruct((N, HIDDEN), jnp.float32)),
        in_specs=[vmem] * 9,
        out_specs=(vmem, vmem),
        scratch_shapes=[pltpu.VMEM((L * N, HIDDEN), jnp.float32)],
    )(x2, h0,
      params["wih"], params["whh"], params["brnn"],
      params["w1"], params["b1"], params["w2"], params["b2"])
    # TODO(synk): for large RL batches (N >> 2) add a "parallel" grid over N so
    # v7x's second TensorCore is used; at N=2 that would be pure overhead.
    return q2.reshape(L, N, A), hT


def init_params(key, n_obs, n_actions):
    """Deterministic init mirroring PyTorch's U(-1/sqrt(fan), 1/sqrt(fan))."""
    ks = jax.random.split(key, 8)

    def u(k, shape, fan):
        bound = 1.0 / jnp.sqrt(fan)
        return jax.random.uniform(k, shape, jnp.float32, -bound, bound)

    b_ih = u(ks[2], (1, HIDDEN), HIDDEN)
    b_hh = u(ks[3], (1, HIDDEN), HIDDEN)
    return {
        # RNN: weight_ih (32, n_obs) -> stored transposed (n_obs, 32), etc.
        "wih": u(ks[0], (n_obs, HIDDEN), HIDDEN),
        "whh": u(ks[1], (HIDDEN, HIDDEN), HIDDEN),
        "brnn": b_ih + b_hh,
        # fc1: Linear(32, 16)
        "w1": u(ks[4], (HIDDEN, FC1), HIDDEN),
        "b1": u(ks[5], (1, FC1), HIDDEN),
        # fc2: Linear(16, n_actions)
        "w2": u(ks[6], (FC1, n_actions), FC1),
        "b2": u(ks[7], (1, n_actions), FC1),
    }


def drqn_reference(x, h0, p):
    """Pure-JAX reference of the PyTorch forward (for correctness check)."""
    def step(h, x_t):
        h_new = jnp.tanh(x_t @ p["wih"] + h @ p["whh"] + p["brnn"])
        return h_new, h_new
    hT, hs = jax.lax.scan(step, h0, x)       # hs: (L, N, 32)
    z = jnp.maximum(hs @ p["w1"] + p["b1"], 0.0)
    q = z @ p["w2"] + p["b2"]
    return q, hT


if __name__ == "__main__":
    L, N, N_OBS, N_ACTIONS = 8, 2, 4, 4

    key = jax.random.PRNGKey(0)
    k_x, k_p = jax.random.split(key)
    x = jax.random.normal(k_x, (L, N, N_OBS), dtype=jnp.float32)
    h0 = jnp.zeros((N, HIDDEN), dtype=jnp.float32)   # hidden_state=None -> zeros
    params = init_params(k_p, N_OBS, N_ACTIONS)

    q, hT = drqn_forward(x, h0, params)
    jax.block_until_ready(q)
    jax.block_until_ready(hT)

    q_ref, hT_ref = drqn_reference(x, h0, params)
    assert jnp.allclose(q, q_ref, atol=1e-5, rtol=1e-5), "Q mismatch"
    assert jnp.allclose(hT, hT_ref, atol=1e-5, rtol=1e-5), "hidden-state mismatch"

    print("KERNEL_OK")
</pallas_src>

<mosaic_0001>
module attributes {stable_mosaic.version = 11 : i64} {
  func.func @drqn_kernel(%arg0: memref<16x4xf32, #tpu.memory_space<vmem>>, %arg1: memref<2x32xf32, #tpu.memory_space<vmem>>, %arg2: memref<4x32xf32, #tpu.memory_space<vmem>>, %arg3: memref<32x32xf32, #tpu.memory_space<vmem>>, %arg4: memref<1x32xf32, #tpu.memory_space<vmem>>, %arg5: memref<32x16xf32, #tpu.memory_space<vmem>>, %arg6: memref<1x16xf32, #tpu.memory_space<vmem>>, %arg7: memref<16x4xf32, #tpu.memory_space<vmem>>, %arg8: memref<1x4xf32, #tpu.memory_space<vmem>>, %arg9: memref<16x4xf32, #tpu.memory_space<vmem>>, %arg10: memref<2x32xf32, #tpu.memory_space<vmem>>, %arg11: memref<16x32xf32, #tpu.memory_space<vmem>>) attributes {dimension_semantics = [], scalar_prefetch = 0 : i64, scratch_operands = 1 : i64, tpu.core_type = #tpu.core_type<tc>} {
    %c0 = arith.constant 0 : index
    %c0_0 = arith.constant 0 : index
    %0 = vector.load %arg0[%c0, %c0_0] : memref<16x4xf32, #tpu.memory_space<vmem>>, vector<16x4xf32>
    %c0_1 = arith.constant 0 : index
    %c0_2 = arith.constant 0 : index
    %1 = vector.load %arg2[%c0_1, %c0_2] : memref<4x32xf32, #tpu.memory_space<vmem>>, vector<4x32xf32>
    %cst = arith.constant dense<0.000000e+00> : vector<16x32xf32>
    %2 = tpu.matmul %0, %1, %cst {dimension_numbers = #tpu.dot_dimension_numbers<[1], [0], [0], [1], [0, 0, 1, 1], [], []>} : vector<16x4xf32>, vector<4x32xf32>, vector<16x32xf32> -> vector<16x32xf32>
    %c0_3 = arith.constant 0 : index
    %c0_4 = arith.constant 0 : index
    %3 = vector.load %arg4[%c0_3, %c0_4] : memref<1x32xf32, #tpu.memory_space<vmem>>, vector<1x32xf32>
    %4 = vector.broadcast %3 : vector<1x32xf32> to vector<16x32xf32>
    %5 = arith.addf %2, %4 : vector<16x32xf32>
    %c0_5 = arith.constant 0 : index
    %c0_6 = arith.constant 0 : index
    %6 = vector.load %arg3[%c0_5, %c0_6] : memref<32x32xf32, #tpu.memory_space<vmem>>, vector<32x32xf32>
    %c0_7 = arith.constant 0 : index
    %c0_8 = arith.constant 0 : index
    %7 = vector.load %arg1[%c0_7, %c0_8] : memref<2x32xf32, #tpu.memory_space<vmem>>, vector<2x32xf32>
    %8 = vector.extract_strided_slice %5 {offsets = [0, 0], sizes = [2, 32], strides = [1, 1]} : vector<16x32xf32> to vector<2x32xf32>
    %cst_9 = arith.constant dense<0.000000e+00> : vector<2x32xf32>
    %9 = tpu.matmul %7, %6, %cst_9 {dimension_numbers = #tpu.dot_dimension_numbers<[1], [0], [0], [1], [0, 0, 1, 1], [], []>} : vector<2x32xf32>, vector<32x32xf32>, vector<2x32xf32> -> vector<2x32xf32>
    %10 = arith.addf %8, %9 : vector<2x32xf32>
    %11 = math.tanh %10 : vector<2x32xf32>
    %c0_10 = arith.constant 0 : index
    %c0_11 = arith.constant 0 : index
    %12 = vector.load %arg11[%c0_10, %c0_11] : memref<16x32xf32, #tpu.memory_space<vmem>>, vector<2x32xf32>
    tpu.vector_store %arg11[%c0_10, %c0_11], %11 {strides = array<i32>} : memref<16x32xf32, #tpu.memory_space<vmem>>, vector<2x32xf32>,
    %13 = vector.extract_strided_slice %5 {offsets = [2, 0], sizes = [2, 32], strides = [1, 1]} : vector<16x32xf32> to vector<2x32xf32>
    %cst_12 = arith.constant dense<0.000000e+00> : vector<2x32xf32>
    %14 = tpu.matmul %11, %6, %cst_12 {dimension_numbers = #tpu.dot_dimension_numbers<[1], [0], [0], [1], [0, 0, 1, 1], [], []>} : vector<2x32xf32>, vector<32x32xf32>, vector<2x32xf32> -> vector<2x32xf32>
    %15 = arith.addf %13, %14 : vector<2x32xf32>
    %16 = math.tanh %15 : vector<2x32xf32>
    %c2 = arith.constant 2 : index
    %c0_13 = arith.constant 0 : index
    %17 = vector.load %arg11[%c2, %c0_13] : memref<16x32xf32, #tpu.memory_space<vmem>>, vector<2x32xf32>
    tpu.vector_store %arg11[%c2, %c0_13], %16 {strides = array<i32>} : memref<16x32xf32, #tpu.memory_space<vmem>>, vector<2x32xf32>,
    %18 = vector.extract_strided_slice %5 {offsets = [4, 0], sizes = [2, 32], strides = [1, 1]} : vector<16x32xf32> to vector<2x32xf32>
    %cst_14 = arith.constant dense<0.000000e+00> : vector<2x32xf32>
    %19 = tpu.matmul %16, %6, %cst_14 {dimension_numbers = #tpu.dot_dimension_numbers<[1], [0], [0], [1], [0, 0, 1, 1], [], []>} : vector<2x32xf32>, vector<32x32xf32>, vector<2x32xf32> -> vector<2x32xf32>
    %20 = arith.addf %18, %19 : vector<2x32xf32>
    %21 = math.tanh %20 : vector<2x32xf32>
    %c4 = arith.constant 4 : index
    %c0_15 = arith.constant 0 : index
    %22 = vector.load %arg11[%c4, %c0_15] : memref<16x32xf32, #tpu.memory_space<vmem>>, vector<2x32xf32>
    tpu.vector_store %arg11[%c4, %c0_15], %21 {strides = array<i32>} : memref<16x32xf32, #tpu.memory_space<vmem>>, vector<2x32xf32>,
    %23 = vector.extract_strided_slice %5 {offsets = [6, 0], sizes = [2, 32], strides = [1, 1]} : vector<16x32xf32> to vector<2x32xf32>
    %cst_16 = arith.constant dense<0.000000e+00> : vector<2x32xf32>
    %24 = tpu.matmul %21, %6, %cst_16 {dimension_numbers = #tpu.dot_dimension_numbers<[1], [0], [0], [1], [0, 0, 1, 1], [], []>} : vector<2x32xf32>, vector<32x32xf32>, vector<2x32xf32> -> vector<2x32xf32>
    %25 = arith.addf %23, %24 : vector<2x32xf32>
    %26 = math.tanh %25 : vector<2x32xf32>
    %c6 = arith.constant 6 : index
    %c0_17 = arith.constant 0 : index
    %27 = vector.load %arg11[%c6, %c0_17] : memref<16x32xf32, #tpu.memory_space<vmem>>, vector<2x32xf32>
    tpu.vector_store %arg11[%c6, %c0_17], %26 {strides = array<i32>} : memref<16x32xf32, #tpu.memory_space<vmem>>, vector<2x32xf32>,
    %28 = vector.extract_strided_slice %5 {offsets = [8, 0], sizes = [2, 32], strides = [1, 1]} : vector<16x32xf32> to vector<2x32xf32>
    %cst_18 = arith.constant dense<0.000000e+00> : vector<2x32xf32>
    %29 = tpu.matmul %26, %6, %cst_18 {dimension_numbers = #tpu.dot_dimension_numbers<[1], [0], [0], [1], [0, 0, 1, 1], [], []>} : vector<2x32xf32>, vector<32x32xf32>, vector<2x32xf32> -> vector<2x32xf32>
    %30 = arith.addf %28, %29 : vector<2x32xf32>
    %31 = math.tanh %30 : vector<2x32xf32>
    %c8 = arith.constant 8 : index
    %c0_19 = arith.constant 0 : index
    %32 = vector.load %arg11[%c8, %c0_19] : memref<16x32xf32, #tpu.memory_space<vmem>>, vector<2x32xf32>
    tpu.vector_store %arg11[%c8, %c0_19], %31 {strides = array<i32>} : memref<16x32xf32, #tpu.memory_space<vmem>>, vector<2x32xf32>,
    %33 = vector.extract_strided_slice %5 {offsets = [10, 0], sizes = [2, 32], strides = [1, 1]} : vector<16x32xf32> to vector<2x32xf32>
    %cst_20 = arith.constant dense<0.000000e+00> : vector<2x32xf32>
    %34 = tpu.matmul %31, %6, %cst_20 {dimension_numbers = #tpu.dot_dimension_numbers<[1], [0], [0], [1], [0, 0, 1, 1], [], []>} : vector<2x32xf32>, vector<32x32xf32>, vector<2x32xf32> -> vector<2x32xf32>
    %35 = arith.addf %33, %34 : vector<2x32xf32>
    %36 = math.tanh %35 : vector<2x32xf32>
    %c10 = arith.constant 10 : index
    %c0_21 = arith.constant 0 : index
    %37 = vector.load %arg11[%c10, %c0_21] : memref<16x32xf32, #tpu.memory_space<vmem>>, vector<2x32xf32>
    tpu.vector_store %arg11[%c10, %c0_21], %36 {strides = array<i32>} : memref<16x32xf32, #tpu.memory_space<vmem>>, vector<2x32xf32>,
    %38 = vector.extract_strided_slice %5 {offsets = [12, 0], sizes = [2, 32], strides = [1, 1]} : vector<16x32xf32> to vector<2x32xf32>
    %cst_22 = arith.constant dense<0.000000e+00> : vector<2x32xf32>
    %39 = tpu.matmul %36, %6, %cst_22 {dimension_numbers = #tpu.dot_dimension_numbers<[1], [0], [0], [1], [0, 0, 1, 1], [], []>} : vector<2x32xf32>, vector<32x32xf32>, vector<2x32xf32> -> vector<2x32xf32>
    %40 = arith.addf %38, %39 : vector<2x32xf32>
    %41 = math.tanh %40 : vector<2x32xf32>
    %c12 = arith.constant 12 : index
    %c0_23 = arith.constant 0 : index
    %42 = vector.load %arg11[%c12, %c0_23] : memref<16x32xf32, #tpu.memory_space<vmem>>, vector<2x32xf32>
    tpu.vector_store %arg11[%c12, %c0_23], %41 {strides = array<i32>} : memref<16x32xf32, #tpu.memory_space<vmem>>, vector<2x32xf32>,
    %43 = vector.extract_strided_slice %5 {offsets = [14, 0], sizes = [2, 32], strides = [1, 1]} : vector<16x32xf32> to vector<2x32xf32>
    %cst_24 = arith.constant dense<0.000000e+00> : vector<2x32xf32>
    %44 = tpu.matmul %41, %6, %cst_24 {dimension_numbers = #tpu.dot_dimension_numbers<[1], [0], [0], [1], [0, 0, 1, 1], [], []>} : vector<2x32xf32>, vector<32x32xf32>, vector<2x32xf32> -> vector<2x32xf32>
    %45 = arith.addf %43, %44 : vector<2x32xf32>
    %46 = math.tanh %45 : vector<2x32xf32>
    %c14 = arith.constant 14 : index
    %c0_25 = arith.constant 0 : index
    %47 = vector.load %arg11[%c14, %c0_25] : memref<16x32xf32, #tpu.memory_space<vmem>>, vector<2x32xf32>
    tpu.vector_store %arg11[%c14, %c0_25], %46 {strides = array<i32>} : memref<16x32xf32, #tpu.memory_space<vmem>>, vector<2x32xf32>,
    %c0_26 = arith.constant 0 : index
    %c0_27 = arith.constant 0 : index
    %48 = vector.load %arg10[%c0_26, %c0_27] : memref<2x32xf32, #tpu.memory_space<vmem>>, vector<2x32xf32>
    tpu.vector_store %arg10[%c0_26, %c0_27], %46 {strides = array<i32>} : memref<2x32xf32, #tpu.memory_space<vmem>>, vector<2x32xf32>,
    %c0_28 = arith.constant 0 : index
    %c0_29 = arith.constant 0 : index
    %49 = vector.load %arg11[%c0_28, %c0_29] : memref<16x32xf32, #tpu.memory_space<vmem>>, vector<16x32xf32>
    %c0_30 = arith.constant 0 : index
    %c0_31 = arith.constant 0 : index
    %50 = vector.load %arg5[%c0_30, %c0_31] : memref<32x16xf32, #tpu.memory_space<vmem>>, vector<32x16xf32>
    %cst_32 = arith.constant dense<0.000000e+00> : vector<16x16xf32>
    %51 = tpu.matmul %49, %50, %cst_32 {dimension_numbers = #tpu.dot_dimension_numbers<[1], [0], [0], [1], [0, 0, 1, 1], [], []>} : vector<16x32xf32>, vector<32x16xf32>, vector<16x16xf32> -> vector<16x16xf32>
    %c0_33 = arith.constant 0 : index
    %c0_34 = arith.constant 0 : index
    %52 = vector.load %arg6[%c0_33, %c0_34] : memref<1x16xf32, #tpu.memory_space<vmem>>, vector<1x16xf32>
    %53 = vector.broadcast %52 : vector<1x16xf32> to vector<16x16xf32>
    %54 = arith.addf %51, %53 : vector<16x16xf32>
    %cst_35 = arith.constant 0.000000e+00 : f32
    %55 = vector.broadcast %cst_35 : f32 to vector<16x16xf32>
    %56 = arith.maximumf %54, %55 : vector<16x16xf32>
    %c0_36 = arith.constant 0 : index
    %c0_37 = arith.constant 0 : index
    %57 = vector.load %arg7[%c0_36, %c0_37] : memref<16x4xf32, #tpu.memory_space<vmem>>, vector<16x4xf32>
    %cst_38 = arith.constant dense<0.000000e+00> : vector<16x4xf32>
    %58 = tpu.matmul %56, %57, %cst_38 {dimension_numbers = #tpu.dot_dimension_numbers<[1], [0], [0], [1], [0, 0, 1, 1], [], []>} : vector<16x16xf32>, vector<16x4xf32>, vector<16x4xf32> -> vector<16x4xf32>
    %c0_39 = arith.constant 0 : index
    %c0_40 = arith.constant 0 : index
    %59 = vector.load %arg8[%c0_39, %c0_40] : memref<1x4xf32, #tpu.memory_space<vmem>>, vector<1x4xf32>
    %60 = vector.broadcast %59 : vector<1x4xf32> to vector<16x4xf32>
    %61 = arith.addf %58, %60 : vector<16x4xf32>
    %c0_41 = arith.constant 0 : index
    %c0_42 = arith.constant 0 : index
    %62 = vector.load %arg9[%c0_41, %c0_42] : memref<16x4xf32, #tpu.memory_space<vmem>>, vector<16x4xf32>
    tpu.vector_store %arg9[%c0_41, %c0_42], %61 {strides = array<i32>} : memref<16x4xf32, #tpu.memory_space<vmem>>, vector<16x4xf32>,
    return
  }
}

</mosaic_0001>

<llo_original>
// kernel: tpu_custom_call.1
$region0: #{tpu_custom_call.1}
  #allocation0 [shape = 'u32[]', space=smem, size = 0x4, offset = 0x4, fixed_abs, tag = 'smem constant byte address 0x4 - core index']
  #allocation1 [shape = 'u32[144,128]{1,0:T(1,128)}', space=vmem, size = 0x12000, scoped, tag = 'internal scratch']
  #allocation2 [shape = 'f32[16,32]{1,0:T(8,128)}', space=vmem, size = 0x2000, scoped, tag = 'scratch operand']
  %s0 = inlined_call_operand.vmem [shape: f32[16,4], index: 0, kind: input, shape index: {}]
  %s1 = inlined_call_operand.vmem [shape: f32[2,32], index: 1, kind: input, shape index: {}]
  %s2 = inlined_call_operand.vmem [shape: f32[4,32], index: 2, kind: input, shape index: {}]
  %s3 = inlined_call_operand.vmem [shape: f32[32,32], index: 3, kind: input, shape index: {}]
  %s4 = inlined_call_operand.vmem [shape: f32[1,32], index: 4, kind: input, shape index: {}]
  %s5 = inlined_call_operand.vmem [shape: f32[32,16], index: 5, kind: input, shape index: {}]
  %s6 = inlined_call_operand.vmem [shape: f32[1,16], index: 6, kind: input, shape index: {}]
  %s7 = inlined_call_operand.vmem [shape: f32[16,4], index: 7, kind: input, shape index: {}]
  %s8 = inlined_call_operand.vmem [shape: f32[1,4], index: 8, kind: input, shape index: {}]
  %s9 = inlined_call_operand.vmem [shape: f32[16,4], index: 9, kind: output, shape index: {0}]
  %s10 = inlined_call_operand.hbm [shape: f32[2,32], index: 10, kind: output, shape index: {1}]
  %11 = xla_tuple %s9, %s10
  %s12 = sld [smem:[#allocation0]]
  $region54: #{tpu_custom_call.1} parent=0
    _
  %s14 = ssub.s32 1, %s12
  %s15 = scalar_select 0, %s14, %s12
  $region1: #{tpu_custom_call.1} parent=0
    #allocation3 [shape = 'u8[1024]{0}', space=vmem, size = 0x400, scoped, tag = 'output window, operand 1, single buffered']
    #allocation4 [shape = 's32[1]{0}', space=sflag, size = 0x4, scoped, tag = 'scoped memory for tpu_custom_call.1']
    %16 = vsyncpa [#allocation4], 0
    // Predicated region
    $region2: #{tpu_custom_call.1} parent=1 // pred_check
      _
    $region3: #{tpu_custom_call.1} parent=1 // pred_check_branch
      %18 = sbr.rel (0) target = $region5
    $region4: #{tpu_custom_call.1} parent=1 // pred_region
      _
    $region5: #{tpu_custom_call.1} parent=1 // pred_fallthru
      _
    // Predicated region
    $region6: #{tpu_custom_call.1} parent=1 // pred_check
      _
    $region7: #{tpu_custom_call.1} parent=1 // pred_check_branch
      %20 = sbr.rel (0) target = $region9
    $region8: #{tpu_custom_call.1} parent=1 // pred_region
      _
    $region9: #{tpu_custom_call.1} parent=1 // pred_fallthru
      _
    // Predicated region
    $region10: #{tpu_custom_call.1} parent=1 // pred_check
      _
    $region11: #{tpu_custom_call.1} parent=1 // pred_check_branch
      %22 = sbr.rel (0) target = $region13
    $region12: #{tpu_custom_call.1} parent=1 // pred_region
      _
    $region13: #{tpu_custom_call.1} parent=1 // pred_fallthru
      _
    // Predicated region
    $region14: #{tpu_custom_call.1} parent=1 // pred_check
      _
    $region15: #{tpu_custom_call.1} parent=1 // pred_check_branch
      %24 = sbr.rel (0) target = $region17
    $region16: #{tpu_custom_call.1} parent=1 // pred_region
      _
    $region17: #{tpu_custom_call.1} parent=1 // pred_fallthru
      _
    // Predicated region
    $region18: #{tpu_custom_call.1} parent=1 // pred_check
      _
    $region19: #{tpu_custom_call.1} parent=1 // pred_check_branch
      %26 = sbr.rel (0) target = $region21
    $region20: #{tpu_custom_call.1} parent=1 // pred_region
      _
    $region21: #{tpu_custom_call.1} parent=1 // pred_fallthru
      _
    // Predicated region
    $region22: #{tpu_custom_call.1} parent=1 // pred_check
      _
    $region23: #{tpu_custom_call.1} parent=1 // pred_check_branch
      %28 = sbr.rel (0) target = $region25
    $region24: #{tpu_custom_call.1} parent=1 // pred_region
      _
    $region25: #{tpu_custom_call.1} parent=1 // pred_fallthru
      _
    // Predicated region
    $region26: #{tpu_custom_call.1} parent=1 // pred_check
      _
    $region27: #{tpu_custom_call.1} parent=1 // pred_check_branch
      %30 = sbr.rel (0) target = $region29
    $region28: #{tpu_custom_call.1} parent=1 // pred_region
      _
    $region29: #{tpu_custom_call.1} parent=1 // pred_fallthru
      _
    // Predicated region
    $region30: #{tpu_custom_call.1} parent=1 // pred_check
      _
    $region31: #{tpu_custom_call.1} parent=1 // pred_check_branch
      %32 = sbr.rel (0) target = $region33
    $region32: #{tpu_custom_call.1} parent=1 // pred_region
      _
    $region33: #{tpu_custom_call.1} parent=1 // pred_fallthru
      _
    // Predicated region
    $region34: #{tpu_custom_call.1} parent=1 // pred_check
      _
    $region35: #{tpu_custom_call.1} parent=1 // pred_check_branch
      %34 = sbr.rel (0) target = $region37
    $region36: #{tpu_custom_call.1} parent=1 // pred_region
      _
    $region37: #{tpu_custom_call.1} parent=1 // pred_fallthru
      _
    %v35 = vld [vmem:[%s0] sm:$0xff]
    %v36 = vld [vmem:[%s0 + $0x8] sm:$0xff]
    %v37 = vld [vmem:[%s2] sm:$0xf]
    %v38 = vld [vmem:[%s4] sm:$0x1]
    %v40 = vlaneseq
    %v41 = vshrl.u32 %v40, 7
    %v42 = vsub.s32 0, %v41
    %v43 = vrot.slane %v38, %v42
    %vm45 = vcmask 31744
    %v47 = vsel %vm45, %v35, 0
    %v50 = vsel %vm45, %v36, 0
    %vm52 = vcmask 1043456
    %v54 = vsel %vm52, %v37, 0
    %56 = vmatprep.subr.mxu0 0.0
    %57 = vmatpush1.msra.mxu0 %v54
    %58 = vmatprep.subr.mxu0 0.0
    %59 = vmatpush1.msra.mxu0 0.0
    %60 = vmatprep.subr.mxu0 0.0
    %61 = vmatpush1.msra.mxu0 0.0
    %62 = vmatprep.subr.mxu0 0.0
    %63 = vmatpush1.msra.mxu0 0.0
    %64 = vmatprep.subr.mxu0 0.0
    %65 = vmatpush1.msra.mxu0 0.0
    %66 = vmatprep.subr.mxu0 0.0
    %67 = vmatpush1.msra.mxu0 0.0
    %68 = vmatprep.subr.mxu0 0.0
    %69 = vmatpush1.msra.mxu0 0.0
    %70 = vmatprep.subr.mxu0 0.0
    %71 = vmatpush1.msra.mxu0 0.0
    %72 = vmatprep.subr.mxu0 0.0
    %73 = vmatpush1.msra.mxu0 0.0
    %74 = vmatprep.subr.mxu0 0.0
    %75 = vmatpush1.msra.mxu0 0.0
    %76 = vmatprep.subr.mxu0 0.0
    %77 = vmatpush1.msra.mxu0 0.0
    %78 = vmatprep.subr.mxu0 0.0
    %79 = vmatpush1.msra.mxu0 0.0
    %80 = vmatprep.subr.mxu0 0.0
    %81 = vmatpush1.msra.mxu0 0.0
    %82 = vmatprep.subr.mxu0 0.0
    %83 = vmatpush1.msra.mxu0 0.0
    %84 = vmatprep.subr.mxu0 0.0
    %85 = vmatpush1.msra.mxu0 0.0
    %86 = vmatprep.subr.mxu0 0.0
    %87 = vmatpush1.msra.mxu0 0.0
    %88 = vmatprep.subr.mxu0 0.0
    %89 = vmatpush1.msra.mxu0 0.0
    %90 = vmatprep.subr.mxu0 0.0
    %91 = vmatpush1.msra.mxu0 0.0
    %92 = vmatprep.subr.mxu0 0.0
    %93 = vmatpush1.msra.mxu0 0.0
    %94 = vmatprep.subr.mxu0 0.0
    %95 = vmatpush1.msra.mxu0 0.0
    %96 = vmatprep.subr.mxu0 0.0
    %97 = vmatpush1.msra.mxu0 0.0
    %98 = vmatprep.subr.mxu0 0.0
    %99 = vmatpush1.msra.mxu0 0.0
    %100 = vmatprep.subr.mxu0 0.0
    %101 = vmatpush1.msra.mxu0 0.0
    %102 = vmatprep.subr.mxu0 0.0
    %103 = vmatpush1.msra.mxu0 0.0
    %104 = vmatprep.subr.mxu0 0.0
    %105 = vmatpush1.msra.mxu0 0.0
    %106 = vmatprep.subr.mxu0 0.0
    %107 = vmatpush1.msra.mxu0 0.0
    %108 = vmatprep.subr.mxu0 0.0
    %109 = vmatpush1.msra.mxu0 0.0
    %110 = vmatprep.subr.mxu0 0.0
    %111 = vmatpush1.msra.mxu0 0.0
    %112 = vmatprep.subr.mxu0 0.0
    %113 = vmatpush1.msra.mxu0 0.0
    %114 = vmatprep.subr.mxu0 0.0
    %115 = vmatpush1.msra.mxu0 0.0
    %116 = vmatprep.subr.mxu0 0.0
    %117 = vmatpush1.msra.mxu0 0.0
    %118 = vmatprep.subr.mxu0 0.0
    %119 = vmatpush1.msra.mxu0 0.0
    %120 = vmatprep.mubr.f32.mxu0 0.0
    %121 = vmatmul.mubr.f32.gmra.mrb[0].mxu0 %v47
    %v122 = vpop.f32.mrb[0].mxu0
    %v123 = vadd.f32 %v43, %v122
    %v124 = vpop.f32.mrb[0].mxu0
    %125 = vmatprep.mubr.f32.mxu0 0.0
    %126 = vmatmul.mubr.f32.gmra.mrb[0].mxu0 %v50
    %v127 = vpop.f32.mrb[0].mxu0
    %v128 = vadd.f32 %v43, %v127
    %v129 = vpop.f32.mrb[0].mxu0
    %130 = vdwg.mxu0
    %v131 = vld [vmem:[%s3] sm:$0xff]
    %v132 = vld [vmem:[%s3 + $0x8] sm:$0xff]
    %v133 = vld [vmem:[%s3 + $0x10] sm:$0xff]
    %v134 = vld [vmem:[%s3 + $0x18] sm:$0xff]
    %v135 = vld [vmem:[%s1] sm:$0x3]
    %vm136 = vcmask 261120
    %v138 = vsel %vm136, %v135, 0
    %140 = vmatprep.subr.mxu0 0.0
    %141 = vmatpush1.msra.mxu0 %v131
    %142 = vmatprep.subr.mxu0 0.0
    %143 = vmatpush1.msra.mxu0 %v132
    %144 = vmatprep.subr.mxu0 0.0
    %145 = vmatpush1.msra.mxu0 %v133
    %146 = vmatprep.subr.mxu0 0.0
    %147 = vmatpush1.msra.mxu0 %v134
    %148 = vmatprep.subr.mxu0 0.0
    %149 = vmatpush1.msra.mxu0 0.0
    %150 = vmatprep.subr.mxu0 0.0
    %151 = vmatpush1.msra.mxu0 0.0
    %152 = vmatprep.subr.mxu0 0.0
    %153 = vmatpush1.msra.mxu0 0.0
    %154 = vmatprep.subr.mxu0 0.0
    %155 = vmatpush1.msra.mxu0 0.0
    %156 = vmatprep.subr.mxu0 0.0
    %157 = vmatpush1.msra.mxu0 0.0
    %158 = vmatprep.subr.mxu0 0.0
    %159 = vmatpush1.msra.mxu0 0.0
    %160 = vmatprep.subr.mxu0 0.0
    %161 = vmatpush1.msra.mxu0 0.0
    %162 = vmatprep.subr.mxu0 0.0
    %163 = vmatpush1.msra.mxu0 0.0
    %164 = vmatprep.subr.mxu0 0.0
    %165 = vmatpush1.msra.mxu0 0.0
    %166 = vmatprep.subr.mxu0 0.0
    %167 = vmatpush1.msra.mxu0 0.0
    %168 = vmatprep.subr.mxu0 0.0
    %169 = vmatpush1.msra.mxu0 0.0
    %170 = vmatprep.subr.mxu0 0.0
    %171 = vmatpush1.msra.mxu0 0.0
    %172 = vmatprep.subr.mxu0 0.0
    %173 = vmatpush1.msra.mxu0 0.0
    %174 = vmatprep.subr.mxu0 0.0
    %175 = vmatpush1.msra.mxu0 0.0
    %176 = vmatprep.subr.mxu0 0.0
    %177 = vmatpush1.msra.mxu0 0.0
    %178 = vmatprep.subr.mxu0 0.0
    %179 = vmatpush1.msra.mxu0 0.0
    %180 = vmatprep.subr.mxu0 0.0
    %181 = vmatpush1.msra.mxu0 0.0
    %182 = vmatprep.subr.mxu0 0.0
    %183 = vmatpush1.msra.mxu0 0.0
    %184 = vmatprep.subr.mxu0 0.0
    %185 = vmatpush1.msra.mxu0 0.0
    %186 = vmatprep.subr.mxu0 0.0
    %187 = vmatpush1.msra.mxu0 0.0
    %188 = vmatprep.subr.mxu0 0.0
    %189 = vmatpush1.msra.mxu0 0.0
    %190 = vmatprep.subr.mxu0 0.0
    %191 = vmatpush1.msra.mxu0 0.0
    %192 = vmatprep.subr.mxu0 0.0
    %193 = vmatpush1.msra.mxu0 0.0
    %194 = vmatprep.subr.mxu0 0.0
    %195 = vmatpush1.msra.mxu0 0.0
    %196 = vmatprep.subr.mxu0 0.0
    %197 = vmatpush1.msra.mxu0 0.0
    %198 = vmatprep.subr.mxu0 0.0
    %199 = vmatpush1.msra.mxu0 0.0
    %200 = vmatprep.subr.mxu0 0.0
    %201 = vmatpush1.msra.mxu0 0.0
    %202 = vmatprep.subr.mxu0 0.0
    %203 = vmatpush1.msra.mxu0 0.0
    %204 = vmatprep.mubr.f32.mxu0 0.0
    %205 = vmatmul.mubr.f32.gmra.mrb[0].mxu0 %v138
    %v206 = vpop.f32.mrb[0].mxu0
    %v207 = vadd.f32 0.0, %v206
    %v208 = vpop.f32.mrb[0].mxu0
    %209 = vdwg.mxu0
    %v210 = vadd.f32 %v123, %v207
    %v211 = vtanh.pop %v210
    %vm212 = vcmask 254976
    %213 = vst.msk [vmem:[#allocation2] sm:$0x3] %vm212, %v211
    %v215 = vsel %vm136, %v211, 0
    %217 = vmatprep.subr.mxu0 0.0
    %218 = vmatpush1.msra.mxu0 %v131
    %219 = vmatprep.subr.mxu0 0.0
    %220 = vmatpush1.msra.mxu0 %v132
    %221 = vmatprep.subr.mxu0 0.0
    %222 = vmatpush1.msra.mxu0 %v133
    %223 = vmatprep.subr.mxu0 0.0
    %224 = vmatpush1.msra.mxu0 %v134
    %225 = vmatprep.subr.mxu0 0.0
    %226 = vmatpush1.msra.mxu0 0.0
    %227 = vmatprep.subr.mxu0 0.0
    %228 = vmatpush1.msra.mxu0 0.0
    %229 = vmatprep.subr.mxu0 0.0
    %230 = vmatpush1.msra.mxu0 0.0
    %231 = vmatprep.subr.mxu0 0.0
    %232 = vmatpush1.msra.mxu0 0.0
    %233 = vmatprep.subr.mxu0 0.0
    %234 = vmatpush1.msra.mxu0 0.0
    %235 = vmatprep.subr.mxu0 0.0
    %236 = vmatpush1.msra.mxu0 0.0
    %237 = vmatprep.subr.mxu0 0.0
    %238 = vmatpush1.msra.mxu0 0.0
    %239 = vmatprep.subr.mxu0 0.0
    %240 = vmatpush1.msra.mxu0 0.0
    %241 = vmatprep.subr.mxu0 0.0
    %242 = vmatpush1.msra.mxu0 0.0
    %243 = vmatprep.subr.mxu0 0.0
    %244 = vmatpush1.msra.mxu0 0.0
    %245 = vmatprep.subr.mxu0 0.0
    %246 = vmatpush1.msra.mxu0 0.0
    %247 = vmatprep.subr.mxu0 0.0
    %248 = vmatpush1.msra.mxu0 0.0
    %249 = vmatprep.subr.mxu0 0.0
    %250 = vmatpush1.msra.mxu0 0.0
    %251 = vmatprep.subr.mxu0 0.0
    %252 = vmatpush1.msra.mxu0 0.0
    %253 = vmatprep.subr.mxu0 0.0
    %254 = vmatpush1.msra.mxu0 0.0
    %255 = vmatprep.subr.mxu0 0.0
    %256 = vmatpush1.msra.mxu0 0.0
    %257 = vmatprep.subr.mxu0 0.0
    %258 = vmatpush1.msra.mxu0 0.0
    %259 = vmatprep.subr.mxu0 0.0
    %260 = vmatpush1.msra.mxu0 0.0
    %261 = vmatprep.subr.mxu0 0.0
    %262 = vmatpush1.msra.mxu0 0.0
    %263 = vmatprep.subr.mxu0 0.0
    %264 = vmatpush1.msra.mxu0 0.0
    %265 = vmatprep.subr.mxu0 0.0
    %266 = vmatpush1.msra.mxu0 0.0
    %267 = vmatprep.subr.mxu0 0.0
    %268 = vmatpush1.msra.mxu0 0.0
    %269 = vmatprep.subr.mxu0 0.0
    %270 = vmatpush1.msra.mxu0 0.0
    %271 = vmatprep.subr.mxu0 0.0
    %272 = vmatpush1.msra.mxu0 0.0
    %273 = vmatprep.subr.mxu0 0.0
    %274 = vmatpush1.msra.mxu0 0.0
    %275 = vmatprep.subr.mxu0 0.0
    %276 = vmatpush1.msra.mxu0 0.0
    %277 = vmatprep.subr.mxu0 0.0
    %278 = vmatpush1.msra.mxu0 0.0
    %279 = vmatprep.subr.mxu0 0.0
    %280 = vmatpush1.msra.mxu0 0.0
    %281 = vmatprep.mubr.f32.mxu0 0.0
    %282 = vmatmul.mubr.f32.gmra.mrb[0].mxu0 %v215
    %v283 = vpop.f32.mrb[0].mxu0
    %v284 = vadd.f32 0.0, %v283
    %v285 = vpop.f32.mrb[0].mxu0
    %286 = vdwg.mxu0
    %v288 = vrot.slane %v284, 6
    %v290 = vadd.f32 %v123, %v288
    %v291 = vtanh.pop %v290
    %vm292 = vcmask 257026
    %293 = vst.msk [vmem:[#allocation2] sm:$0xc] %vm292, %v291
    %v295 = vrot.slane %v291, 2
    %v296 = vsel %vm136, %v295, 0
    %298 = vmatprep.subr.mxu0 0.0
    %299 = vmatpush1.msra.mxu0 %v131
    %300 = vmatprep.subr.mxu0 0.0
    %301 = vmatpush1.msra.mxu0 %v132
    %302 = vmatprep.subr.mxu0 0.0
    %303 = vmatpush1.msra.mxu0 %v133
    %304 = vmatprep.subr.mxu0 0.0
    %305 = vmatpush1.msra.mxu0 %v134
    %306 = vmatprep.subr.mxu0 0.0
    %307 = vmatpush1.msra.mxu0 0.0
    %308 = vmatprep.subr.mxu0 0.0
    %309 = vmatpush1.msra.mxu0 0.0
    %310 = vmatprep.subr.mxu0 0.0
    %311 = vmatpush1.msra.mxu0 0.0
    %312 = vmatprep.subr.mxu0 0.0
    %313 = vmatpush1.msra.mxu0 0.0
    %314 = vmatprep.subr.mxu0 0.0
    %315 = vmatpush1.msra.mxu0 0.0
    %316 = vmatprep.subr.mxu0 0.0
    %317 = vmatpush1.msra.mxu0 0.0
    %318 = vmatprep.subr.mxu0 0.0
    %319 = vmatpush1.msra.mxu0 0.0
    %320 = vmatprep.subr.mxu0 0.0
    %321 = vmatpush1.msra.mxu0 0.0
    %322 = vmatprep.subr.mxu0 0.0
    %323 = vmatpush1.msra.mxu0 0.0
    %324 = vmatprep.subr.mxu0 0.0
    %325 = vmatpush1.msra.mxu0 0.0
    %326 = vmatprep.subr.mxu0 0.0
    %327 = vmatpush1.msra.mxu0 0.0
    %328 = vmatprep.subr.mxu0 0.0
    %329 = vmatpush1.msra.mxu0 0.0
    %330 = vmatprep.subr.mxu0 0.0
    %331 = vmatpush1.msra.mxu0 0.0
    %332 = vmatprep.subr.mxu0 0.0
    %333 = vmatpush1.msra.mxu0 0.0
    %334 = vmatprep.subr.mxu0 0.0
    %335 = vmatpush1.msra.mxu0 0.0
    %336 = vmatprep.subr.mxu0 0.0
    %337 = vmatpush1.msra.mxu0 0.0
    %338 = vmatprep.subr.mxu0 0.0
    %339 = vmatpush1.msra.mxu0 0.0
    %340 = vmatprep.subr.mxu0 0.0
    %341 = vmatpush1.msra.mxu0 0.0
    %342 = vmatprep.subr.mxu0 0.0
    %343 = vmatpush1.msra.mxu0 0.0
    %344 = vmatprep.subr.mxu0 0.0
    %345 = vmatpush1.msra.mxu0 0.0
    %346 = vmatprep.subr.mxu0 0.0
    %347 = vmatpush1.msra.mxu0 0.0
    %348 = vmatprep.subr.mxu0 0.0
    %349 = vmatpush1.msra.mxu0 0.0
    %350 = vmatprep.subr.mxu0 0.0
    %351 = vmatpush1.msra.mxu0 0.0
    %352 = vmatprep.subr.mxu0 0.0
    %353 = vmatpush1.msra.mxu0 0.0
    %354 = vmatprep.subr.mxu0 0.0
    %355 = vmatpush1.msra.mxu0 0.0
    %356 = vmatprep.subr.mxu0 0.0
    %357 = vmatpush1.msra.mxu0 0.0
    %358 = vmatprep.subr.mxu0 0.0
    %359 = vmatpush1.msra.mxu0 0.0
    %360 = vmatprep.subr.mxu0 0.0
    %361 = vmatpush1.msra.mxu0 0.0
    %362 = vmatprep.mubr.f32.mxu0 0.0
    %363 = vmatmul.mubr.f32.gmra.mrb[0].mxu0 %v296
    %v364 = vpop.f32.mrb[0].mxu0
    %v365 = vadd.f32 0.0, %v364
    %v366 = vpop.f32.mrb[0].mxu0
    %367 = vdwg.mxu0
    %v369 = vrot.slane %v365, 4
    %v371 = vadd.f32 %v123, %v369
    %v372 = vtanh.pop %v371
    %vm373 = vcmask 259076
    %374 = vst.msk [vmem:[#allocation2] sm:$0x30] %vm373, %v372
    %v376 = vrot.slane %v372, 4
    %v377 = vsel %vm136, %v376, 0
    %379 = vmatprep.subr.mxu0 0.0
    %380 = vmatpush1.msra.mxu0 %v131
    %381 = vmatprep.subr.mxu0 0.0
    %382 = vmatpush1.msra.mxu0 %v132
    %383 = vmatprep.subr.mxu0 0.0
    %384 = vmatpush1.msra.mxu0 %v133
    %385 = vmatprep.subr.mxu0 0.0
    %386 = vmatpush1.msra.mxu0 %v134
    %387 = vmatprep.subr.mxu0 0.0
    %388 = vmatpush1.msra.mxu0 0.0
    %389 = vmatprep.subr.mxu0 0.0
    %390 = vmatpush1.msra.mxu0 0.0
    %391 = vmatprep.subr.mxu0 0.0
    %392 = vmatpush1.msra.mxu0 0.0
    %393 = vmatprep.subr.mxu0 0.0
    %394 = vmatpush1.msra.mxu0 0.0
    %395 = vmatprep.subr.mxu0 0.0
    %396 = vmatpush1.msra.mxu0 0.0
    %397 = vmatprep.subr.mxu0 0.0
    %398 = vmatpush1.msra.mxu0 0.0
    %399 = vmatprep.subr.mxu0 0.0
    %400 = vmatpush1.msra.mxu0 0.0
    %401 = vmatprep.subr.mxu0 0.0
    %402 = vmatpush1.msra.mxu0 0.0
    %403 = vmatprep.subr.mxu0 0.0
    %404 = vmatpush1.msra.mxu0 0.0
    %405 = vmatprep.subr.mxu0 0.0
    %406 = vmatpush1.msra.mxu0 0.0
    %407 = vmatprep.subr.mxu0 0.0
    %408 = vmatpush1.msra.mxu0 0.0
    %409 = vmatprep.subr.mxu0 0.0
    %410 = vmatpush1.msra.mxu0 0.0
    %411 = vmatprep.subr.mxu0 0.0
    %412 = vmatpush1.msra.mxu0 0.0
    %413 = vmatprep.subr.mxu0 0.0
    %414 = vmatpush1.msra.mxu0 0.0
    %415 = vmatprep.subr.mxu0 0.0
    %416 = vmatpush1.msra.mxu0 0.0
    %417 = vmatprep.subr.mxu0 0.0
    %418 = vmatpush1.msra.mxu0 0.0
    %419 = vmatprep.subr.mxu0 0.0
    %420 = vmatpush1.msra.mxu0 0.0
    %421 = vmatprep.subr.mxu0 0.0
    %422 = vmatpush1.msra.mxu0 0.0
    %423 = vmatprep.subr.mxu0 0.0
    %424 = vmatpush1.msra.mxu0 0.0
    %425 = vmatprep.subr.mxu0 0.0
    %426 = vmatpush1.msra.mxu0 0.0
    %427 = vmatprep.subr.mxu0 0.0
    %428 = vmatpush1.msra.mxu0 0.0
    %429 = vmatprep.subr.mxu0 0.0
    %430 = vmatpush1.msra.mxu0 0.0
    %431 = vmatprep.subr.mxu0 0.0
    %432 = vmatpush1.msra.mxu0 0.0
    %433 = vmatprep.subr.mxu0 0.0
    %434 = vmatpush1.msra.mxu0 0.0
    %435 = vmatprep.subr.mxu0 0.0
    %436 = vmatpush1.msra.mxu0 0.0
    %437 = vmatprep.subr.mxu0 0.0
    %438 = vmatpush1.msra.mxu0 0.0
    %439 = vmatprep.subr.mxu0 0.0
    %440 = vmatpush1.msra.mxu0 0.0
    %441 = vmatprep.subr.mxu0 0.0
    %442 = vmatpush1.msra.mxu0 0.0
    %443 = vmatprep.mubr.f32.mxu0 0.0
    %444 = vmatmul.mubr.f32.gmra.mrb[0].mxu0 %v377
    %v445 = vpop.f32.mrb[0].mxu0
    %v446 = vadd.f32 0.0, %v445
    %v447 = vpop.f32.mrb[0].mxu0
    %448 = vdwg.mxu0
    %v450 = vrot.slane %v446, 2
    %v452 = vadd.f32 %v123, %v450
    %v453 = vtanh.pop %v452
    %vm454 = vcmask 261126
    %455 = vst.msk [vmem:[#allocation2] sm:$0xc0] %vm454, %v453
    %v457 = vrot.slane %v453, 6
    %v458 = vsel %vm136, %v457, 0
    %460 = vmatprep.subr.mxu0 0.0
    %461 = vmatpush1.msra.mxu0 %v131
    %462 = vmatprep.subr.mxu0 0.0
    %463 = vmatpush1.msra.mxu0 %v132
    %464 = vmatprep.subr.mxu0 0.0
    %465 = vmatpush1.msra.mxu0 %v133
    %466 = vmatprep.subr.mxu0 0.0
    %467 = vmatpush1.msra.mxu0 %v134
    %468 = vmatprep.subr.mxu0 0.0
    %469 = vmatpush1.msra.mxu0 0.0
    %470 = vmatprep.subr.mxu0 0.0
    %471 = vmatpush1.msra.mxu0 0.0
    %472 = vmatprep.subr.mxu0 0.0
    %473 = vmatpush1.msra.mxu0 0.0
    %474 = vmatprep.subr.mxu0 0.0
    %475 = vmatpush1.msra.mxu0 0.0
    %476 = vmatprep.subr.mxu0 0.0
    %477 = vmatpush1.msra.mxu0 0.0
    %478 = vmatprep.subr.mxu0 0.0
    %479 = vmatpush1.msra.mxu0 0.0
    %480 = vmatprep.subr.mxu0 0.0
    %481 = vmatpush1.msra.mxu0 0.0
    %482 = vmatprep.subr.mxu0 0.0
    %483 = vmatpush1.msra.mxu0 0.0
    %484 = vmatprep.subr.mxu0 0.0
    %485 = vmatpush1.msra.mxu0 0.0
    %486 = vmatprep.subr.mxu0 0.0
    %487 = vmatpush1.msra.mxu0 0.0
    %488 = vmatprep.subr.mxu0 0.0
    %489 = vmatpush1.msra.mxu0 0.0
    %490 = vmatprep.subr.mxu0 0.0
    %491 = vmatpush1.msra.mxu0 0.0
    %492 = vmatprep.subr.mxu0 0.0
    %493 = vmatpush1.msra.mxu0 0.0
    %494 = vmatprep.subr.mxu0 0.0
    %495 = vmatpush1.msra.mxu0 0.0
    %496 = vmatprep.subr.mxu0 0.0
    %497 = vmatpush1.msra.mxu0 0.0
    %498 = vmatprep.subr.mxu0 0.0
    %499 = vmatpush1.msra.mxu0 0.0
    %500 = vmatprep.subr.mxu0 0.0
    %501 = vmatpush1.msra.mxu0 0.0
    %502 = vmatprep.subr.mxu0 0.0
    %503 = vmatpush1.msra.mxu0 0.0
    %504 = vmatprep.subr.mxu0 0.0
    %505 = vmatpush1.msra.mxu0 0.0
    %506 = vmatprep.subr.mxu0 0.0
    %507 = vmatpush1.msra.mxu0 0.0
    %508 = vmatprep.subr.mxu0 0.0
    %509 = vmatpush1.msra.mxu0 0.0
    %510 = vmatprep.subr.mxu0 0.0
    %511 = vmatpush1.msra.mxu0 0.0
    %512 = vmatprep.subr.mxu0 0.0
    %513 = vmatpush1.msra.mxu0 0.0
    %514 = vmatprep.subr.mxu0 0.0
    %515 = vmatpush1.msra.mxu0 0.0
    %516 = vmatprep.subr.mxu0 0.0
    %517 = vmatpush1.msra.mxu0 0.0
    %518 = vmatprep.subr.mxu0 0.0
    %519 = vmatpush1.msra.mxu0 0.0
    %520 = vmatprep.subr.mxu0 0.0
    %521 = vmatpush1.msra.mxu0 0.0
    %522 = vmatprep.subr.mxu0 0.0
    %523 = vmatpush1.msra.mxu0 0.0
    %524 = vmatprep.mubr.f32.mxu0 0.0
    %525 = vmatmul.mubr.f32.gmra.mrb[0].mxu0 %v458
    %v526 = vpop.f32.mrb[0].mxu0
    %v527 = vadd.f32 0.0, %v526
    %v528 = vpop.f32.mrb[0].mxu0
    %529 = vdwg.mxu0
    %v530 = vadd.f32 %v128, %v527
    %v531 = vtanh.pop %v530
    %532 = vst.msk [vmem:[#allocation2 + $0x8] sm:$0x3] %vm212, %v531
    %v534 = vsel %vm136, %v531, 0
    %536 = vmatprep.subr.mxu0 0.0
    %537 = vmatpush1.msra.mxu0 %v131
    %538 = vmatprep.subr.mxu0 0.0
    %539 = vmatpush1.msra.mxu0 %v132
    %540 = vmatprep.subr.mxu0 0.0
    %541 = vmatpush1.msra.mxu0 %v133
    %542 = vmatprep.subr.mxu0 0.0
    %543 = vmatpush1.msra.mxu0 %v134
    %544 = vmatprep.subr.mxu0 0.0
    %545 = vmatpush1.msra.mxu0 0.0
    %546 = vmatprep.subr.mxu0 0.0
    %547 = vmatpush1.msra.mxu0 0.0
    %548 = vmatprep.subr.mxu0 0.0
    %549 = vmatpush1.msra.mxu0 0.0
    %550 = vmatprep.subr.mxu0 0.0
    %551 = vmatpush1.msra.mxu0 0.0
    %552 = vmatprep.subr.mxu0 0.0
    %553 = vmatpush1.msra.mxu0 0.0
    %554 = vmatprep.subr.mxu0 0.0
    %555 = vmatpush1.msra.mxu0 0.0
    %556 = vmatprep.subr.mxu0 0.0
    %557 = vmatpush1.msra.mxu0 0.0
    %558 = vmatprep.subr.mxu0 0.0
    %559 = vmatpush1.msra.mxu0 0.0
    %560 = vmatprep.subr.mxu0 0.0
    %561 = vmatpush1.msra.mxu0 0.0
    %562 = vmatprep.subr.mxu0 0.0
    %563 = vmatpush1.msra.mxu0 0.0
    %564 = vmatprep.subr.mxu0 0.0
    %565 = vmatpush1.msra.mxu0 0.0
    %566 = vmatprep.subr.mxu0 0.0
    %567 = vmatpush1.msra.mxu0 0.0
    %568 = vmatprep.subr.mxu0 0.0
    %569 = vmatpush1.msra.mxu0 0.0
    %570 = vmatprep.subr.mxu0 0.0
    %571 = vmatpush1.msra.mxu0 0.0
    %572 = vmatprep.subr.mxu0 0.0
    %573 = vmatpush1.msra.mxu0 0.0
    %574 = vmatprep.subr.mxu0 0.0
    %575 = vmatpush1.msra.mxu0 0.0
    %576 = vmatprep.subr.mxu0 0.0
    %577 = vmatpush1.msra.mxu0 0.0
    %578 = vmatprep.subr.mxu0 0.0
    %579 = vmatpush1.msra.mxu0 0.0
    %580 = vmatprep.subr.mxu0 0.0
    %581 = vmatpush1.msra.mxu0 0.0
    %582 = vmatprep.subr.mxu0 0.0
    %583 = vmatpush1.msra.mxu0 0.0
    %584 = vmatprep.subr.mxu0 0.0
    %585 = vmatpush1.msra.mxu0 0.0
    %586 = vmatprep.subr.mxu0 0.0
    %587 = vmatpush1.msra.mxu0 0.0
    %588 = vmatprep.subr.mxu0 0.0
    %589 = vmatpush1.msra.mxu0 0.0
    %590 = vmatprep.subr.mxu0 0.0
    %591 = vmatpush1.msra.mxu0 0.0
    %592 = vmatprep.subr.mxu0 0.0
    %593 = vmatpush1.msra.mxu0 0.0
    %594 = vmatprep.subr.mxu0 0.0
    %595 = vmatpush1.msra.mxu0 0.0
    %596 = vmatprep.subr.mxu0 0.0
    %597 = vmatpush1.msra.mxu0 0.0
    %598 = vmatprep.subr.mxu0 0.0
    %599 = vmatpush1.msra.mxu0 0.0
    %600 = vmatprep.mubr.f32.mxu0 0.0
    %601 = vmatmul.mubr.f32.gmra.mrb[0].mxu0 %v534
    %v602 = vpop.f32.mrb[0].mxu0
    %v603 = vadd.f32 0.0, %v602
    %v604 = vpop.f32.mrb[0].mxu0
    %605 = vdwg.mxu0
    %v607 = vrot.slane %v603, 6
    %v609 = vadd.f32 %v128, %v607
    %v610 = vtanh.pop %v609
    %611 = vst.msk [vmem:[#allocation2 + $0x8] sm:$0xc] %vm292, %v610
    %v613 = vrot.slane %v610, 2
    %v614 = vsel %vm136, %v613, 0
    %616 = vmatprep.subr.mxu0 0.0
    %617 = vmatpush1.msra.mxu0 %v131
    %618 = vmatprep.subr.mxu0 0.0
    %619 = vmatpush1.msra.mxu0 %v132
    %620 = vmatprep.subr.mxu0 0.0
    %621 = vmatpush1.msra.mxu0 %v133
    %622 = vmatprep.subr.mxu0 0.0
    %623 = vmatpush1.msra.mxu0 %v134
    %624 = vmatprep.subr.mxu0 0.0
    %625 = vmatpush1.msra.mxu0 0.0
    %626 = vmatprep.subr.mxu0 0.0
    %627 = vmatpush1.msra.mxu0 0.0
    %628 = vmatprep.subr.mxu0 0.0
    %629 = vmatpush1.msra.mxu0 0.0
    %630 = vmatprep.subr.mxu0 0.0
    %631 = vmatpush1.msra.mxu0 0.0
    %632 = vmatprep.subr.mxu0 0.0
    %633 = vmatpush1.msra.mxu0 0.0
    %634 = vmatprep.subr.mxu0 0.0
    %635 = vmatpush1.msra.mxu0 0.0
    %636 = vmatprep.subr.mxu0 0.0
    %637 = vmatpush1.msra.mxu0 0.0
    %638 = vmatprep.subr.mxu0 0.0
    %639 = vmatpush1.msra.mxu0 0.0
    %640 = vmatprep.subr.mxu0 0.0
    %641 = vmatpush1.msra.mxu0 0.0
    %642 = vmatprep.subr.mxu0 0.0
    %643 = vmatpush1.msra.mxu0 0.0
    %644 = vmatprep.subr.mxu0 0.0
    %645 = vmatpush1.msra.mxu0 0.0
    %646 = vmatprep.subr.mxu0 0.0
    %647 = vmatpush1.msra.mxu0 0.0
    %648 = vmatprep.subr.mxu0 0.0
    %649 = vmatpush1.msra.mxu0 0.0
    %650 = vmatprep.subr.mxu0 0.0
    %651 = vmatpush1.msra.mxu0 0.0
    %652 = vmatprep.subr.mxu0 0.0
    %653 = vmatpush1.msra.mxu0 0.0
    %654 = vmatprep.subr.mxu0 0.0
    %655 = vmatpush1.msra.mxu0 0.0
    %656 = vmatprep.subr.mxu0 0.0
    %657 = vmatpush1.msra.mxu0 0.0
    %658 = vmatprep.subr.mxu0 0.0
    %659 = vmatpush1.msra.mxu0 0.0
    %660 = vmatprep.subr.mxu0 0.0
    %661 = vmatpush1.msra.mxu0 0.0
    %662 = vmatprep.subr.mxu0 0.0
    %663 = vmatpush1.msra.mxu0 0.0
    %664 = vmatprep.subr.mxu0 0.0
    %665 = vmatpush1.msra.mxu0 0.0
    %666 = vmatprep.subr.mxu0 0.0
    %667 = vmatpush1.msra.mxu0 0.0
    %668 = vmatprep.subr.mxu0 0.0
    %669 = vmatpush1.msra.mxu0 0.0
    %670 = vmatprep.subr.mxu0 0.0
    %671 = vmatpush1.msra.mxu0 0.0
    %672 = vmatprep.subr.mxu0 0.0
    %673 = vmatpush1.msra.mxu0 0.0
    %674 = vmatprep.subr.mxu0 0.0
    %675 = vmatpush1.msra.mxu0 0.0
    %676 = vmatprep.subr.mxu0 0.0
    %677 = vmatpush1.msra.mxu0 0.0
    %678 = vmatprep.subr.mxu0 0.0
    %679 = vmatpush1.msra.mxu0 0.0
    %680 = vmatprep.mubr.f32.mxu0 0.0
    %681 = vmatmul.mubr.f32.gmra.mrb[0].mxu0 %v614
    %v682 = vpop.f32.mrb[0].mxu0
    %v683 = vadd.f32 0.0, %v682
    %v684 = vpop.f32.mrb[0].mxu0
    %685 = vdwg.mxu0
    %v687 = vrot.slane %v683, 4
    %v689 = vadd.f32 %v128, %v687
    %v690 = vtanh.pop %v689
    %691 = vst.msk [vmem:[#allocation2 + $0x8] sm:$0x30] %vm373, %v690
    %v693 = vrot.slane %v690, 4
    %v694 = vsel %vm136, %v693, 0
    %696 = vmatprep.subr.mxu0 0.0
    %697 = vmatpush1.msra.mxu0 %v131
    %698 = vmatprep.subr.mxu0 0.0
    %699 = vmatpush1.msra.mxu0 %v132
    %700 = vmatprep.subr.mxu0 0.0
    %701 = vmatpush1.msra.mxu0 %v133
    %702 = vmatprep.subr.mxu0 0.0
    %703 = vmatpush1.msra.mxu0 %v134
    %704 = vmatprep.subr.mxu0 0.0
    %705 = vmatpush1.msra.mxu0 0.0
    %706 = vmatprep.subr.mxu0 0.0
    %707 = vmatpush1.msra.mxu0 0.0
    %708 = vmatprep.subr.mxu0 0.0
    %709 = vmatpush1.msra.mxu0 0.0
    %710 = vmatprep.subr.mxu0 0.0
    %711 = vmatpush1.msra.mxu0 0.0
    %712 = vmatprep.subr.mxu0 0.0
    %713 = vmatpush1.msra.mxu0 0.0
    %714 = vmatprep.subr.mxu0 0.0
    %715 = vmatpush1.msra.mxu0 0.0
    %716 = vmatprep.subr.mxu0 0.0
    %717 = vmatpush1.msra.mxu0 0.0
    %718 = vmatprep.subr.mxu0 0.0
    %719 = vmatpush1.msra.mxu0 0.0
    %720 = vmatprep.subr.mxu0 0.0
    %721 = vmatpush1.msra.mxu0 0.0
    %722 = vmatprep.subr.mxu0 0.0
    %723 = vmatpush1.msra.mxu0 0.0
    %724 = vmatprep.subr.mxu0 0.0
    %725 = vmatpush1.msra.mxu0 0.0
    %726 = vmatprep.subr.mxu0 0.0
    %727 = vmatpush1.msra.mxu0 0.0
    %728 = vmatprep.subr.mxu0 0.0
    %729 = vmatpush1.msra.mxu0 0.0
    %730 = vmatprep.subr.mxu0 0.0
    %731 = vmatpush1.msra.mxu0 0.0
    %732 = vmatprep.subr.mxu0 0.0
    %733 = vmatpush1.msra.mxu0 0.0
    %734 = vmatprep.subr.mxu0 0.0
    %735 = vmatpush1.msra.mxu0 0.0
    %736 = vmatprep.subr.mxu0 0.0
    %737 = vmatpush1.msra.mxu0 0.0
    %738 = vmatprep.subr.mxu0 0.0
    %739 = vmatpush1.msra.mxu0 0.0
    %740 = vmatprep.subr.mxu0 0.0
    %741 = vmatpush1.msra.mxu0 0.0
    %742 = vmatprep.subr.mxu0 0.0
    %743 = vmatpush1.msra.mxu0 0.0
    %744 = vmatprep.subr.mxu0 0.0
    %745 = vmatpush1.msra.mxu0 0.0
    %746 = vmatprep.subr.mxu0 0.0
    %747 = vmatpush1.msra.mxu0 0.0
    %748 = vmatprep.subr.mxu0 0.0
    %749 = vmatpush1.msra.mxu0 0.0
    %750 = vmatprep.subr.mxu0 0.0
    %751 = vmatpush1.msra.mxu0 0.0
    %752 = vmatprep.subr.mxu0 0.0
    %753 = vmatpush1.msra.mxu0 0.0
    %754 = vmatprep.subr.mxu0 0.0
    %755 = vmatpush1.msra.mxu0 0.0
    %756 = vmatprep.subr.mxu0 0.0
    %757 = vmatpush1.msra.mxu0 0.0
    %758 = vmatprep.subr.mxu0 0.0
    %759 = vmatpush1.msra.mxu0 0.0
    %760 = vmatprep.mubr.f32.mxu0 0.0
    %761 = vmatmul.mubr.f32.gmra.mrb[0].mxu0 %v694
    %v762 = vpop.f32.mrb[0].mxu0
    %v763 = vadd.f32 0.0, %v762
    %v764 = vpop.f32.mrb[0].mxu0
    %765 = vdwg.mxu0
    %v767 = vrot.slane %v763, 2
    %v769 = vadd.f32 %v128, %v767
    %v770 = vtanh.pop %v769
    %771 = vst.msk [vmem:[#allocation2 + $0x8] sm:$0xc0] %vm454, %v770
    %772 = vst.msk [vmem:[#allocation3 - $0x6] sm:$0xc0] %vm454, %v770
    %v773 = vld [vmem:[#allocation2] sm:$0xff]
    %v774 = vld [vmem:[#allocation2 + $0x8] sm:$0xff]
    %v775 = vld [vmem:[%s5] sm:$0xff]
    %v776 = vld [vmem:[%s5 + $0x8] sm:$0xff]
    %v777 = vld [vmem:[%s5 + $0x10] sm:$0xff]
    %v778 = vld [vmem:[%s5 + $0x18] sm:$0xff]
    %v779 = vld [vmem:[%s6] sm:$0x1]
    %v781 = vlaneseq
    %v782 = vshrl.u32 %v781, 7
    %v783 = vsub.s32 0, %v782
    %v784 = vrot.slane %v779, %v783
    %v787 = vsel %vm136, %v773, 0
    %v790 = vsel %vm136, %v774, 0
    %792 = vmatprep.subr.mxu0 0.0
    %793 = vmatpush1.msra.mxu0 %v775
    %794 = vmatprep.subr.mxu0 0.0
    %795 = vmatpush1.msra.mxu0 %v776
    %796 = vmatprep.subr.mxu0 0.0
    %797 = vmatpush1.msra.mxu0 %v777
    %798 = vmatprep.subr.mxu0 0.0
    %799 = vmatpush1.msra.mxu0 %v778
    %800 = vmatprep.subr.mxu0 0.0
    %801 = vmatpush1.msra.mxu0 0.0
    %802 = vmatprep.subr.mxu0 0.0
    %803 = vmatpush1.msra.mxu0 0.0
    %804 = vmatprep.subr.mxu0 0.0
    %805 = vmatpush1.msra.mxu0 0.0
    %806 = vmatprep.subr.mxu0 0.0
    %807 = vmatpush1.msra.mxu0 0.0
    %808 = vmatprep.subr.mxu0 0.0
    %809 = vmatpush1.msra.mxu0 0.0
    %810 = vmatprep.subr.mxu0 0.0
    %811 = vmatpush1.msra.mxu0 0.0
    %812 = vmatprep.subr.mxu0 0.0
    %813 = vmatpush1.msra.mxu0 0.0
    %814 = vmatprep.subr.mxu0 0.0
    %815 = vmatpush1.msra.mxu0 0.0
    %816 = vmatprep.subr.mxu0 0.0
    %817 = vmatpush1.msra.mxu0 0.0
    %818 = vmatprep.subr.mxu0 0.0
    %819 = vmatpush1.msra.mxu0 0.0
    %820 = vmatprep.subr.mxu0 0.0
    %821 = vmatpush1.msra.mxu0 0.0
    %822 = vmatprep.subr.mxu0 0.0
    %823 = vmatpush1.msra.mxu0 0.0
    %824 = vmatprep.subr.mxu0 0.0
    %825 = vmatpush1.msra.mxu0 0.0
    %826 = vmatprep.subr.mxu0 0.0
    %827 = vmatpush1.msra.mxu0 0.0
    %828 = vmatprep.subr.mxu0 0.0
    %829 = vmatpush1.msra.mxu0 0.0
    %830 = vmatprep.subr.mxu0 0.0
    %831 = vmatpush1.msra.mxu0 0.0
    %832 = vmatprep.subr.mxu0 0.0
    %833 = vmatpush1.msra.mxu0 0.0
    %834 = vmatprep.subr.mxu0 0.0
    %835 = vmatpush1.msra.mxu0 0.0
    %836 = vmatprep.subr.mxu0 0.0
    %837 = vmatpush1.msra.mxu0 0.0
    %838 = vmatprep.subr.mxu0 0.0
    %839 = vmatpush1.msra.mxu0 0.0
    %840 = vmatprep.subr.mxu0 0.0
    %841 = vmatpush1.msra.mxu0 0.0
    %842 = vmatprep.subr.mxu0 0.0
    %843 = vmatpush1.msra.mxu0 0.0
    %844 = vmatprep.subr.mxu0 0.0
    %845 = vmatpush1.msra.mxu0 0.0
    %846 = vmatprep.subr.mxu0 0.0
    %847 = vmatpush1.msra.mxu0 0.0
    %848 = vmatprep.subr.mxu0 0.0
    %849 = vmatpush1.msra.mxu0 0.0
    %850 = vmatprep.subr.mxu0 0.0
    %851 = vmatpush1.msra.mxu0 0.0
    %852 = vmatprep.subr.mxu0 0.0
    %853 = vmatpush1.msra.mxu0 0.0
    %854 = vmatprep.subr.mxu0 0.0
    %855 = vmatpush1.msra.mxu0 0.0
    %856 = vmatprep.mubr.f32.mxu0 0.0
    %857 = vmatmul.mubr.f32.gmra.mrb[0].mxu0 %v787
    %v858 = vpop.f32.mrb[0].mxu0
    %v859 = vadd.f32 %v784, %v858
    %v860 = vpop.f32.mrb[0].mxu0
    %861 = vmatprep.mubr.f32.mxu0 0.0
    %862 = vmatmul.mubr.f32.gmra.mrb[0].mxu0 %v790
    %v863 = vpop.f32.mrb[0].mxu0
    %v864 = vadd.f32 %v784, %v863
    %v865 = vpop.f32.mrb[0].mxu0
    %866 = vdwg.mxu0
    %v867 = vmax.f32 %v859, 0.0
    %v868 = vmax.f32 %v864, 0.0
    %v869 = vld [vmem:[%s7] sm:$0xff]
    %v870 = vld [vmem:[%s7 + $0x8] sm:$0xff]
    %v871 = vld [vmem:[%s8] sm:$0x1]
    %v873 = vlaneseq
    %v874 = vshrl.u32 %v873, 7
    %v875 = vsub.s32 0, %v874
    %v876 = vrot.slane %v871, %v875
    %vm878 = vcmask 130048
    %v880 = vsel %vm878, %v867, 0
    %v883 = vsel %vm878, %v868, 0
    %885 = vmatprep.subr.mxu0 0.0
    %886 = vmatpush1.msra.mxu0 %v869
    %887 = vmatprep.subr.mxu0 0.0
    %888 = vmatpush1.msra.mxu0 %v870
    %889 = vmatprep.subr.mxu0 0.0
    %890 = vmatpush1.msra.mxu0 0.0
    %891 = vmatprep.subr.mxu0 0.0
    %892 = vmatpush1.msra.mxu0 0.0
    %893 = vmatprep.subr.mxu0 0.0
    %894 = vmatpush1.msra.mxu0 0.0
    %895 = vmatprep.subr.mxu0 0.0
    %896 = vmatpush1.msra.mxu0 0.0
    %897 = vmatprep.subr.mxu0 0.0
    %898 = vmatpush1.msra.mxu0 0.0
    %899 = vmatprep.subr.mxu0 0.0
    %900 = vmatpush1.msra.mxu0 0.0
    %901 = vmatprep.subr.mxu0 0.0
    %902 = vmatpush1.msra.mxu0 0.0
    %903 = vmatprep.subr.mxu0 0.0
    %904 = vmatpush1.msra.mxu0 0.0
    %905 = vmatprep.subr.mxu0 0.0
    %906 = vmatpush1.msra.mxu0 0.0
    %907 = vmatprep.subr.mxu0 0.0
    %908 = vmatpush1.msra.mxu0 0.0
    %909 = vmatprep.subr.mxu0 0.0
    %910 = vmatpush1.msra.mxu0 0.0
    %911 = vmatprep.subr.mxu0 0.0
    %912 = vmatpush1.msra.mxu0 0.0
    %913 = vmatprep.subr.mxu0 0.0
    %914 = vmatpush1.msra.mxu0 0.0
    %915 = vmatprep.subr.mxu0 0.0
    %916 = vmatpush1.msra.mxu0 0.0
    %917 = vmatprep.subr.mxu0 0.0
    %918 = vmatpush1.msra.mxu0 0.0
    %919 = vmatprep.subr.mxu0 0.0
    %920 = vmatpush1.msra.mxu0 0.0
    %921 = vmatprep.subr.mxu0 0.0
    %922 = vmatpush1.msra.mxu0 0.0
    %923 = vmatprep.subr.mxu0 0.0
    %924 = vmatpush1.msra.mxu0 0.0
    %925 = vmatprep.subr.mxu0 0.0
    %926 = vmatpush1.msra.mxu0 0.0
    %927 = vmatprep.subr.mxu0 0.0
    %928 = vmatpush1.msra.mxu0 0.0
    %929 = vmatprep.subr.mxu0 0.0
    %930 = vmatpush1.msra.mxu0 0.0
    %931 = vmatprep.subr.mxu0 0.0
    %932 = vmatpush1.msra.mxu0 0.0
    %933 = vmatprep.subr.mxu0 0.0
    %934 = vmatpush1.msra.mxu0 0.0
    %935 = vmatprep.subr.mxu0 0.0
    %936 = vmatpush1.msra.mxu0 0.0
    %937 = vmatprep.subr.mxu0 0.0
    %938 = vmatpush1.msra.mxu0 0.0
    %939 = vmatprep.subr.mxu0 0.0
    %940 = vmatpush1.msra.mxu0 0.0
    %941 = vmatprep.subr.mxu0 0.0
    %942 = vmatpush1.msra.mxu0 0.0
    %943 = vmatprep.subr.mxu0 0.0
    %944 = vmatpush1.msra.mxu0 0.0
    %945 = vmatprep.subr.mxu0 0.0
    %946 = vmatpush1.msra.mxu0 0.0
    %947 = vmatprep.subr.mxu0 0.0
    %948 = vmatpush1.msra.mxu0 0.0
    %949 = vmatprep.mubr.f32.mxu0 0.0
    %950 = vmatmul.mubr.f32.gmra.mrb[0].mxu0 %v880
    %v951 = vpop.f32.mrb[0].mxu0
    %v952 = vadd.f32 %v876, %v951
    %v953 = vpop.f32.mrb[0].mxu0
    %954 = vmatprep.mubr.f32.mxu0 0.0
    %955 = vmatmul.mubr.f32.gmra.mrb[0].mxu0 %v883
    %v956 = vpop.f32.mrb[0].mxu0
    %v957 = vadd.f32 %v876, %v956
    %v958 = vpop.f32.mrb[0].mxu0
    %959 = vdwg.mxu0
    %960 = vst.msk [vmem:[%s9] sm:$0xff] %vm45, %v952
    %961 = vst.msk [vmem:[%s9 + $0x8] sm:$0xff] %vm45, %v957
    // Predicated region
    $region38: #{tpu_custom_call.1} parent=1 // pred_check
      _
    $region39: #{tpu_custom_call.1} parent=1 // pred_check_branch
      %963 = sbr.rel (0) target = $region41
    $region40: #{tpu_custom_call.1} parent=1 // pred_region
      _
    $region41: #{tpu_custom_call.1} parent=1 // pred_fallthru
      _
    // Predicated region
    $region42: #{tpu_custom_call.1} parent=1 // pred_check
      _
    $region43: #{tpu_custom_call.1} parent=1 // pred_check_branch
      %965 = sbr.rel (0) target = $region45
    $region44: #{tpu_custom_call.1} parent=1 // pred_region
      %s967 = ssub.s32 32, 32
      %968 = vsyncadd [#allocation4], %s967
      %s970 = sshll.u32 [#allocation3], 4
      %s971 = int_to_ptr.vmem [resolvable:$true] %s970
      %973 = dma.vmem_to_hbm [thread:$0]  %s971, 32, %s10, [#allocation4]
    $region45: #{tpu_custom_call.1} parent=1 // pred_fallthru
      _
    // Predicated region
    $region46: #{tpu_custom_call.1} parent=1 // pred_check
      _
    $region47: #{tpu_custom_call.1} parent=1 // pred_check_branch
      %975 = sbr.rel (0) target = $region49
    $region48: #{tpu_custom_call.1} parent=1 // pred_region
      _
    $region49: #{tpu_custom_call.1} parent=1 // pred_fallthru
      _
    // Predicated region
    $region50: #{tpu_custom_call.1} parent=1 // pred_check
      _
    $region51: #{tpu_custom_call.1} parent=1 // pred_check_branch
      %977 = sbr.rel (0) target = $region53
    $region52: #{tpu_custom_call.1} parent=1 // pred_region
      %978 = dma.done [#allocation4], 32
    $region53: #{tpu_custom_call.1} parent=1 // pred_fallthru
      _
    %979 = vsyncpa [#allocation4], 1

</llo_original>
